<compile_context>
chip_gen: v6e
topology: v6e:2x2x1
jax: 0.10.0
libtpu: 0.0.40
codegen_flags: <defaults>
</compile_context>

<pallas_src>
import jax
import jax.numpy as jnp
from jax import lax
from jax.experimental import pallas as pl
from jax.experimental.pallas import tpu as pltpu


def crf_nll_kernel(maxlen_ref, em_ref, tags_ref, mask_ref,
                   start_ref, end_ref, transT_ref, tflat_ref, llh_ref):
    """llh[0, b] = log_partition[b] - gold_path_score[b] for this batch tile.

    em_ref   : (S, T, B)  emissions, tags on sublanes, batch on lanes
    tags_ref : (S, B) i32
    mask_ref : (S, B) f32   (row 0 all ones for real columns)
    start_ref/end_ref : (T, 1)
    transT_ref : (T, T) with transT[j, i] = trans[i, j]
    tflat_ref  : (T*T, 1) with row i*T+j = trans[i, j]
    """
    S, T, B = em_ref.shape
    TT = tflat_ref.shape[0]

    start = start_ref[...]                                    # (T, 1)
    end = end_ref[...]                                         # (T, 1)
    transT = transT_ref[...]                                   # (T, T)
    tflat = tflat_ref[...]                                     # (TT, 1)

    # Hoisted, per-destination-column shift for the recursion logsumexp:
    #   c[j] = max_i trans[i, j];  expA[j, i] = exp(trans[i, j] - c[j]) in (0, 1].
    # NOTE: exact only up to underflow; hard-constrained CRFs (-inf transitions) would
    # need the reference's per-(b, j) max.  Fine for learned transitions (~+-0.1).
    col_max = jnp.max(transT, axis=1, keepdims=True)           # (T, 1)
    expA = jnp.exp(transT - col_max)                           # (T, T)

    tag_iota = lax.broadcasted_iota(jnp.int32, (T, B), 0)      # tag index on sublanes
    pair_iota = lax.broadcasted_iota(jnp.int32, (TT, B), 0)    # pair index on sublanes

    # ---------------- step 0 ----------------
    em0 = em_ref[0]                                            # (T, B)
    tags0 = tags_ref[0:1, :]                                   # (1, B) i32
    oh0 = (tag_iota == tags0).astype(jnp.float32)              # (T, B)
    score = start + em0                                        # (T, B)
    # numerator init: start_transitions[tags0] + emissions[0, b, tags0]
    num = jnp.sum(oh0 * score, axis=0, keepdims=True)          # (1, B)
    # last observed tag (== tags[seq_len-1] for the standard contiguous prefix mask)
    last_tags = tags0                                          # (1, B) i32
    prev_tags = tags0                                          # (1, B) i32

    # ---------------- steps 1 .. maxlen-1 (masked tail skipped) ----------------
    def body(i, carry):
        score, num, last_tags, prev_tags = carry
        e_i = em_ref[i]                                        # (T, B)
        t_i = tags_ref[pl.ds(i, 1), :]                         # (1, B)
        m_i = mask_ref[pl.ds(i, 1), :]                         # (1, B)

        # -- denominator recursion: max-shifted exp-matmul --
        m = jnp.max(score, axis=0, keepdims=True)              # (1, B)  XLU
        p = jnp.exp(score - m)                                 # (T, B)  EUP, <= 1
        # acc[j, b] = sum_i exp(trans[i,j]-c[j]) * exp(score[i,b]-m[b])
        # (for very small T a T-term VPU multiply-accumulate is an alternative on v5e)
        acc = jnp.dot(expA, p, preferred_element_type=jnp.float32)   # (T, B)  MXU
        nxt = m + col_max + jnp.log(acc) + e_i                 # (T, B)
        score = jnp.where(m_i > 0.0, nxt, score)

        # -- numerator: pure VPU/XLU filler, no MXU --
        oh_i = (tag_iota == t_i).astype(jnp.float32)           # (T, B)
        emit = jnp.sum(oh_i * e_i, axis=0, keepdims=True)      # (1, B) emissions[i,b,t_i]
        pair = prev_tags * T + t_i                             # (1, B)
        oh_pair = (pair_iota == pair).astype(jnp.float32)      # (TT, B)
        tr = jnp.sum(oh_pair * tflat, axis=0, keepdims=True)   # (1, B) trans[t_{i-1}, t_i]
        num = num + m_i * (emit + tr)

        last_tags = jnp.where(m_i > 0.0, t_i, last_tags)
        return score, num, last_tags, t_i

    nsteps = maxlen_ref[pl.program_id(0)]                      # scalar from SMEM
    score, num, last_tags, _ = lax.fori_loop(
        1, nsteps, body, (score, num, last_tags, prev_tags))

    # numerator end term: end_transitions[last_tags]
    oh_last = (tag_iota == last_tags).astype(jnp.float32)      # (T, B)
    num = num + jnp.sum(oh_last * end, axis=0, keepdims=True)  # (1, B)

    # denominator: logsumexp over tags of (score + end)
    sfin = score + end                                          # (T, B)
    mf = jnp.max(sfin, axis=0, keepdims=True)                   # (1, B)
    den = mf + jnp.log(jnp.sum(jnp.exp(sfin - mf), axis=0, keepdims=True))

    llh_ref[...] = den - num


def _pick_batch_tile(B):
    if B <= 128:
        return B                                   # single full-dim block
    for tb in (512, 256, 128):                     # prefer wide tiles, but keep >=2 tiles
        if (B + tb - 1) // tb >= 2:
            return tb
    return 128


def crf_forward(emissions, tags, mask, start_transitions, end_transitions, transitions,
                reduction="sum"):
    """Mirrors CRF.forward (batch_first=False). Returns (B,) for 'none', scalar otherwise."""
    S, B, T = emissions.shape
    maskf = mask.astype(jnp.float32)

    TB = _pick_batch_tile(B)
    B_pad = ((B + TB - 1) // TB) * TB
    nb = B_pad // TB

    # (S, T, B): num_tags on sublanes, batch on lanes.
    em_t = jnp.transpose(emissions.astype(jnp.float32), (0, 2, 1))
    tags_p = tags.astype(jnp.int32)
    mask_p = maskf
    if B_pad != B:
        padb = B_pad - B
        em_t = jnp.pad(em_t, ((0, 0), (0, 0), (0, padb)))
        tags_p = jnp.pad(tags_p, ((0, 0), (0, padb)))
        mask_p = jnp.pad(mask_p, ((0, 0), (0, padb)))          # padded columns: all-zero mask

    # Per-tile max sequence length (scalar-prefetched) bounds the recursion loop.
    lengths = jnp.sum(mask_p, axis=0).astype(jnp.int32)        # (B_pad,)
    tile_maxlen = jnp.maximum(jnp.max(lengths.reshape(nb, TB), axis=1), 1)  # (nb,)

    start2 = start_transitions.reshape(T, 1).astype(jnp.float32)
    end2 = end_transitions.reshape(T, 1).astype(jnp.float32)
    transT = jnp.transpose(transitions.astype(jnp.float32))    # transT[j, i] = trans[i, j]
    tflat = transitions.astype(jnp.float32).reshape(T * T, 1)  # row i*T+j = trans[i, j]

    # VMEM budget from actual (padded) block sizes, double-buffered inputs + params.
    lane = ((TB + 127) // 128) * 128
    Tpad = ((T + 7) // 8) * 8
    Spad = ((S + 7) // 8) * 8
    TTpad = ((T * T + 7) // 8) * 8
    block_bytes = (2 * (S * Tpad * lane * 4)        # emissions
                   + 2 * 2 * (Spad * lane * 4)      # tags + mask
                   + 2 * (8 * lane * 4))            # output
    param_bytes = (3 * Tpad + TTpad) * 128 * 4
    vmem_limit = max(16 << 20, min(int((block_bytes + param_bytes) * 1.25) + (2 << 20),
                                   112 << 20))
    # TODO(synk): tile S (second "arbitrary" grid axis with `score`/`num` carried in VMEM
    # scratch via pl.when init/finalize) once 2*S*Tpad*lane*4 approaches physical VMEM
    # (64 MiB on v7x) for very long sequences.

    out = pl.pallas_call(
        crf_nll_kernel,
        out_shape=jax.ShapeDtypeStruct((1, B_pad), jnp.float32),
        grid_spec=pltpu.PrefetchScalarGridSpec(
            num_scalar_prefetch=1,                   # tile_maxlen -> SMEM
            grid=(nb,),
            in_specs=[
                pl.BlockSpec((S, T, TB), lambda b, ml: (0, 0, b)),   # emissions (pipelined)
                pl.BlockSpec((S, TB), lambda b, ml: (0, b)),         # tags
                pl.BlockSpec((S, TB), lambda b, ml: (0, b)),         # mask
                pl.BlockSpec((T, 1), lambda b, ml: (0, 0)),          # start (resident)
                pl.BlockSpec((T, 1), lambda b, ml: (0, 0)),          # end   (resident)
                pl.BlockSpec((T, T), lambda b, ml: (0, 0)),          # trans^T (resident)
                pl.BlockSpec((T * T, 1), lambda b, ml: (0, 0)),      # trans flat (resident)
            ],
            out_specs=pl.BlockSpec((1, TB), lambda b, ml: (0, b)),
        ),
        compiler_params=pltpu.CompilerParams(
            dimension_semantics=("parallel",),
            vmem_limit_bytes=vmem_limit),
    )(tile_maxlen, em_t, tags_p, mask_p, start2, end2, transT, tflat)

    llh = out[0, :B]
    if reduction == "none":
        return llh
    if reduction == "sum":
        return jnp.sum(llh)
    if reduction == "mean":
        return jnp.mean(llh)
    assert reduction == "token_mean"
    return jnp.sum(llh) / jnp.sum(maskf)


def crf_forward_ref(emissions, tags, mask, start, end, trans, reduction="sum"):
    """Pure-JAX reference, line-for-line port of the PyTorch module."""
    S, B, T = emissions.shape
    maskf = mask.astype(jnp.float32)
    arange_b = jnp.arange(B)
    # numerator
    score = start[tags[0]] + emissions[0, arange_b, tags[0]]
    for i in range(1, S):
        score = score + trans[tags[i - 1], tags[i]] * maskf[i]
        score = score + emissions[i, arange_b, tags[i]] * maskf[i]
    seq_ends = maskf.astype(jnp.int32).sum(0) - 1
    last_tags = tags[seq_ends, arange_b]
    numerator = score + end[last_tags]
    # denominator
    sc = start + emissions[0]
    for i in range(1, S):
        nxt = jax.scipy.special.logsumexp(
            sc[:, :, None] + trans[None, :, :] + emissions[i][:, None, :], axis=1)
        sc = jnp.where(maskf[i][:, None] > 0, nxt, sc)
    sc = sc + end
    denominator = jax.scipy.special.logsumexp(sc, axis=1)
    llh = denominator - numerator
    if reduction == "none":
        return llh
    if reduction == "sum":
        return jnp.sum(llh)
    if reduction == "mean":
        return jnp.mean(llh)
    return jnp.sum(llh) / jnp.sum(maskf)


if __name__ == "__main__":
    key = jax.random.PRNGKey(0)
    S, B, T = 8, 4, 5  # seq_length, batch_size, num_tags

    k1, k2, k3, k4, k5 = jax.random.split(key, 5)
    # Parameters: uniform(-0.1, 0.1), same as CRF.reset_parameters.
    start_transitions = jax.random.uniform(k1, (T,), minval=-0.1, maxval=0.1, dtype=jnp.float32)
    end_transitions = jax.random.uniform(k2, (T,), minval=-0.1, maxval=0.1, dtype=jnp.float32)
    transitions = jax.random.uniform(k3, (T, T), minval=-0.1, maxval=0.1, dtype=jnp.float32)

    emissions = jax.random.normal(k4, (S, B, T), dtype=jnp.float32)
    tags = jax.random.randint(k5, (S, B), 0, T, dtype=jnp.int32)
    # mask: first timestep must be all on (as asserted by the module)
    lengths = jnp.array([S, 5, S, 3], dtype=jnp.int32)
    mask = (jnp.arange(S)[:, None] < lengths[None, :]).astype(jnp.uint8)

    nll = crf_forward(emissions, tags, mask, start_transitions, end_transitions,
                      transitions, reduction="sum")
    nll = jax.block_until_ready(nll)

    ref = crf_forward_ref(emissions, tags, mask, start_transitions, end_transitions,
                          transitions, reduction="sum")
    assert jnp.allclose(nll, ref, atol=1e-4, rtol=1e-4), (nll, ref)

    # also check per-sequence values
    nll_none = jax.block_until_ready(
        crf_forward(emissions, tags, mask, start_transitions, end_transitions,
                    transitions, reduction="none"))
    ref_none = crf_forward_ref(emissions, tags, mask, start_transitions, end_transitions,
                               transitions, reduction="none")
    assert jnp.allclose(nll_none, ref_none, atol=1e-4, rtol=1e-4), (nll_none, ref_none)
    print("KERNEL_OK")
</pallas_src>

<mosaic_0001>
module attributes {stable_mosaic.version = 11 : i64} {
  func.func @crf_nll_kernel(%arg0: i32, %arg1: memref<1xi32, #tpu.memory_space<smem>>, %arg2: memref<8x5x4xf32, #tpu.memory_space<vmem>>, %arg3: memref<8x4xi32, #tpu.memory_space<vmem>>, %arg4: memref<8x4xf32, #tpu.memory_space<vmem>>, %arg5: memref<5x1xf32, #tpu.memory_space<vmem>>, %arg6: memref<5x1xf32, #tpu.memory_space<vmem>>, %arg7: memref<5x5xf32, #tpu.memory_space<vmem>>, %arg8: memref<25x1xf32, #tpu.memory_space<vmem>>, %arg9: memref<1x4xf32, #tpu.memory_space<vmem>>) attributes {dimension_semantics = [#tpu.dimension_semantics<parallel>], iteration_bounds = array<i64: 1>, scalar_prefetch = 1 : i64, scratch_operands = 0 : i64, tpu.core_type = #tpu.core_type<tc>, window_params = [{transform_indices = @transform_0, window_bounds = array<i64: 8, 5, 4>}, {transform_indices = @transform_1, window_bounds = array<i64: 8, 4>}, {transform_indices = @transform_2, window_bounds = array<i64: 8, 4>}, {pipeline_mode = #tpu.pipeline_mode<synchronous>, transform_indices = @transform_3, window_bounds = array<i64: 5, 1>}, {pipeline_mode = #tpu.pipeline_mode<synchronous>, transform_indices = @transform_4, window_bounds = array<i64: 5, 1>}, {pipeline_mode = #tpu.pipeline_mode<synchronous>, transform_indices = @transform_5, window_bounds = array<i64: 5, 5>}, {pipeline_mode = #tpu.pipeline_mode<synchronous>, transform_indices = @transform_6, window_bounds = array<i64: 25, 1>}, {transform_indices = @transform_7, window_bounds = array<i64: 1, 4>}]} {
    %c0 = arith.constant 0 : index
    %c0_0 = arith.constant 0 : index
    %0 = vector.load %arg5[%c0, %c0_0] : memref<5x1xf32, #tpu.memory_space<vmem>>, vector<5x1xf32>
    %c0_1 = arith.constant 0 : index
    %c0_2 = arith.constant 0 : index
    %1 = vector.load %arg6[%c0_1, %c0_2] : memref<5x1xf32, #tpu.memory_space<vmem>>, vector<5x1xf32>
    %c0_3 = arith.constant 0 : index
    %c0_4 = arith.constant 0 : index
    %2 = vector.load %arg7[%c0_3, %c0_4] : memref<5x5xf32, #tpu.memory_space<vmem>>, vector<5x5xf32>
    %c0_5 = arith.constant 0 : index
    %c0_6 = arith.constant 0 : index
    %3 = vector.load %arg8[%c0_5, %c0_6] : memref<25x1xf32, #tpu.memory_space<vmem>>, vector<25x1xf32>
    %cst = arith.constant dense<0xFF800000> : vector<5xf32>
    %4 = vector.multi_reduction <maximumf>, %2, %cst [1] : vector<5x5xf32> to vector<5xf32>
    %5 = vector.shape_cast %4 : vector<5xf32> to vector<5x1xf32>
    %6 = vector.broadcast %5 : vector<5x1xf32> to vector<5x5xf32>
    %7 = arith.subf %2, %6 : vector<5x5xf32>
    %8 = math.exp %7 : vector<5x5xf32>
    %9 = tpu.iota {dimensions = array<i32: 0>} : vector<5x4xi32>
    %10 = tpu.iota {dimensions = array<i32: 0>} : vector<25x4xi32>
    %c0_7 = arith.constant 0 : index
    %c0_8 = arith.constant 0 : index
    %c0_9 = arith.constant 0 : index
    %11 = vector.load %arg2[%c0_7, %c0_8, %c0_9] : memref<8x5x4xf32, #tpu.memory_space<vmem>>, vector<1x5x4xf32>
    %12 = vector.shape_cast %11 : vector<1x5x4xf32> to vector<5x4xf32>
    %c0_10 = arith.constant 0 : index
    %c0_11 = arith.constant 0 : index
    %13 = vector.load %arg3[%c0_10, %c0_11] : memref<8x4xi32, #tpu.memory_space<vmem>>, vector<1x4xi32>
    %14 = vector.broadcast %13 : vector<1x4xi32> to vector<5x4xi32>
    %15 = arith.cmpi eq, %9, %14 : vector<5x4xi32>
    %16 = arith.extui %15 : vector<5x4xi1> to vector<5x4xi32>
    %17 = arith.sitofp %16 : vector<5x4xi32> to vector<5x4xf32>
    %18 = vector.broadcast %0 : vector<5x1xf32> to vector<5x4xf32>
    %19 = arith.addf %18, %12 : vector<5x4xf32>
    %20 = arith.mulf %17, %19 : vector<5x4xf32>
    %cst_12 = arith.constant dense<0.000000e+00> : vector<4xf32>
    %21 = vector.multi_reduction <add>, %20, %cst_12 [0] : vector<5x4xf32> to vector<4xf32>
    %22 = vector.shape_cast %21 : vector<4xf32> to vector<1x4xf32>
    %23 = arith.index_cast %arg0 : i32 to index
    %24 = memref.load %arg1[%23] : memref<1xi32, #tpu.memory_space<smem>>
    %c1_i32 = arith.constant 1 : i32
    %25 = arith.subi %24, %c1_i32 : i32
    %26 = arith.addi %c1_i32, %25 : i32
    %c1_i32_13 = arith.constant 1 : i32
    %27:4 = scf.for %arg10 = %c1_i32 to %26 step %c1_i32_13 iter_args(%arg11 = %19, %arg12 = %22, %arg13 = %13, %arg14 = %13) -> (vector<5x4xf32>, vector<1x4xf32>, vector<1x4xi32>, vector<1x4xi32>)  : i32 {
      %50 = arith.index_cast %arg10 : i32 to index
      %c0_19 = arith.constant 0 : index
      %c0_20 = arith.constant 0 : index
      %51 = vector.load %arg2[%50, %c0_19, %c0_20] : memref<8x5x4xf32, #tpu.memory_space<vmem>>, vector<1x5x4xf32>
      %52 = vector.shape_cast %51 : vector<1x5x4xf32> to vector<5x4xf32>
      %53 = arith.index_cast %arg10 : i32 to index
      %c0_21 = arith.constant 0 : index
      %54 = vector.load %arg3[%53, %c0_21] : memref<8x4xi32, #tpu.memory_space<vmem>>, vector<1x4xi32>
      %55 = arith.index_cast %arg10 : i32 to index
      %c0_22 = arith.constant 0 : index
      %56 = vector.load %arg4[%55, %c0_22] : memref<8x4xf32, #tpu.memory_space<vmem>>, vector<1x4xf32>
      %cst_23 = arith.constant dense<0xFF800000> : vector<4xf32>
      %57 = vector.multi_reduction <maximumf>, %arg11, %cst_23 [0] : vector<5x4xf32> to vector<4xf32>
      %58 = vector.shape_cast %57 : vector<4xf32> to vector<1x4xf32>
      %59 = vector.broadcast %58 : vector<1x4xf32> to vector<5x4xf32>
      %60 = arith.subf %arg11, %59 : vector<5x4xf32>
      %61 = math.exp %60 : vector<5x4xf32>
      %cst_24 = arith.constant dense<0.000000e+00> : vector<5x4xf32>
      %62 = tpu.matmul %8, %61, %cst_24 {dimension_numbers = #tpu.dot_dimension_numbers<[1], [0], [0], [1], [0, 0, 1, 1], [], []>} : vector<5x5xf32>, vector<5x4xf32>, vector<5x4xf32> -> vector<5x4xf32>
      %63 = vector.broadcast %58 : vector<1x4xf32> to vector<5x4xf32>
      %64 = vector.broadcast %5 : vector<5x1xf32> to vector<5x4xf32>
      %65 = arith.addf %63, %64 : vector<5x4xf32>
      %66 = math.log %62 : vector<5x4xf32>
      %67 = arith.addf %65, %66 : vector<5x4xf32>
      %68 = arith.addf %67, %52 : vector<5x4xf32>
      %cst_25 = arith.constant 0.000000e+00 : f32
      %69 = vector.broadcast %cst_25 : f32 to vector<1x4xf32>
      %70 = arith.cmpf ogt, %56, %69 : vector<1x4xf32>
      %71 = vector.shape_cast %70 : vector<1x4xi1> to vector<1x4xi1>
      %72 = vector.broadcast %71 : vector<1x4xi1> to vector<5x4xi1>
      %73 = arith.select %72, %68, %arg11 : vector<5x4xi1>, vector<5x4xf32>
      %74 = vector.broadcast %54 : vector<1x4xi32> to vector<5x4xi32>
      %75 = arith.cmpi eq, %9, %74 : vector<5x4xi32>
      %76 = arith.extui %75 : vector<5x4xi1> to vector<5x4xi32>
      %77 = arith.sitofp %76 : vector<5x4xi32> to vector<5x4xf32>
      %78 = arith.mulf %77, %52 : vector<5x4xf32>
      %cst_26 = arith.constant dense<0.000000e+00> : vector<4xf32>
      %79 = vector.multi_reduction <add>, %78, %cst_26 [0] : vector<5x4xf32> to vector<4xf32>
      %80 = vector.shape_cast %79 : vector<4xf32> to vector<1x4xf32>
      %c5_i32 = arith.constant 5 : i32
      %81 = vector.broadcast %c5_i32 : i32 to vector<1x4xi32>
      %82 = arith.muli %arg14, %81 : vector<1x4xi32>
      %83 = arith.addi %82, %54 : vector<1x4xi32>
      %84 = vector.broadcast %83 : vector<1x4xi32> to vector<25x4xi32>
      %85 = arith.cmpi eq, %10, %84 : vector<25x4xi32>
      %86 = arith.extui %85 : vector<25x4xi1> to vector<25x4xi32>
      %87 = arith.sitofp %86 : vector<25x4xi32> to vector<25x4xf32>
      %88 = vector.broadcast %3 : vector<25x1xf32> to vector<25x4xf32>
      %89 = arith.mulf %87, %88 : vector<25x4xf32>
      %cst_27 = arith.constant dense<0.000000e+00> : vector<4xf32>
      %90 = vector.multi_reduction <add>, %89, %cst_27 [0] : vector<25x4xf32> to vector<4xf32>
      %91 = vector.shape_cast %90 : vector<4xf32> to vector<1x4xf32>
      %92 = arith.addf %80, %91 : vector<1x4xf32>
      %93 = arith.mulf %56, %92 : vector<1x4xf32>
      %94 = arith.addf %arg12, %93 : vector<1x4xf32>
      %cst_28 = arith.constant 0.000000e+00 : f32
      %95 = vector.broadcast %cst_28 : f32 to vector<1x4xf32>
      %96 = arith.cmpf ogt, %56, %95 : vector<1x4xf32>
      %97 = arith.select %96, %54, %arg13 : vector<1x4xi1>, vector<1x4xi32>
      scf.yield %73, %94, %97, %54 : vector<5x4xf32>, vector<1x4xf32>, vector<1x4xi32>, vector<1x4xi32>
    }
    %28 = vector.broadcast %27#2 : vector<1x4xi32> to vector<5x4xi32>
    %29 = arith.cmpi eq, %9, %28 : vector<5x4xi32>
    %30 = arith.extui %29 : vector<5x4xi1> to vector<5x4xi32>
    %31 = arith.sitofp %30 : vector<5x4xi32> to vector<5x4xf32>
    %32 = vector.broadcast %1 : vector<5x1xf32> to vector<5x4xf32>
    %33 = arith.mulf %31, %32 : vector<5x4xf32>
    %cst_14 = arith.constant dense<0.000000e+00> : vector<4xf32>
    %34 = vector.multi_reduction <add>, %33, %cst_14 [0] : vector<5x4xf32> to vector<4xf32>
    %35 = vector.shape_cast %34 : vector<4xf32> to vector<1x4xf32>
    %36 = arith.addf %27#1, %35 : vector<1x4xf32>
    %37 = vector.broadcast %1 : vector<5x1xf32> to vector<5x4xf32>
    %38 = arith.addf %27#0, %37 : vector<5x4xf32>
    %cst_15 = arith.constant dense<0xFF800000> : vector<4xf32>
    %39 = vector.multi_reduction <maximumf>, %38, %cst_15 [0] : vector<5x4xf32> to vector<4xf32>
    %40 = vector.shape_cast %39 : vector<4xf32> to vector<1x4xf32>
    %41 = vector.broadcast %40 : vector<1x4xf32> to vector<5x4xf32>
    %42 = arith.subf %38, %41 : vector<5x4xf32>
    %43 = math.exp %42 : vector<5x4xf32>
    %cst_16 = arith.constant dense<0.000000e+00> : vector<4xf32>
    %44 = vector.multi_reduction <add>, %43, %cst_16 [0] : vector<5x4xf32> to vector<4xf32>
    %45 = vector.shape_cast %44 : vector<4xf32> to vector<1x4xf32>
    %46 = math.log %45 : vector<1x4xf32>
    %47 = arith.addf %40, %46 : vector<1x4xf32>
    %48 = arith.subf %47, %36 : vector<1x4xf32>
    %c0_17 = arith.constant 0 : index
    %c0_18 = arith.constant 0 : index
    %49 = vector.load %arg9[%c0_17, %c0_18] : memref<1x4xf32, #tpu.memory_space<vmem>>, vector<1x4xf32>
    tpu.vector_store %arg9[%c0_17, %c0_18], %48 {strides = array<i32>} : memref<1x4xf32, #tpu.memory_space<vmem>>, vector<1x4xf32>,
    return
  }
  func.func @transform_0(%arg0: i32, %arg1: memref<1xi32, #tpu.memory_space<smem>>) -> (i32, i32, i32) {
    %c0_i32 = arith.constant 0 : i32
    %c0_i32_0 = arith.constant 0 : i32
    %c0_i32_1 = arith.constant 0 : i32
    return %c0_i32, %c0_i32_0, %arg0 : i32, i32, i32
  }
  func.func @transform_1(%arg0: i32, %arg1: memref<1xi32, #tpu.memory_space<smem>>) -> (i32, i32) {
    %c0_i32 = arith.constant 0 : i32
    %c0_i32_0 = arith.constant 0 : i32
    return %c0_i32, %arg0 : i32, i32
  }
  func.func @transform_2(%arg0: i32, %arg1: memref<1xi32, #tpu.memory_space<smem>>) -> (i32, i32) {
    %c0_i32 = arith.constant 0 : i32
    %c0_i32_0 = arith.constant 0 : i32
    return %c0_i32, %arg0 : i32, i32
  }
  func.func @transform_3(%arg0: i32, %arg1: memref<1xi32, #tpu.memory_space<smem>>) -> (i32, i32) {
    %c0_i32 = arith.constant 0 : i32
    %c0_i32_0 = arith.constant 0 : i32
    %c0_i32_1 = arith.constant 0 : i32
    return %c0_i32, %c0_i32_0 : i32, i32
  }
  func.func @transform_4(%arg0: i32, %arg1: memref<1xi32, #tpu.memory_space<smem>>) -> (i32, i32) {
    %c0_i32 = arith.constant 0 : i32
    %c0_i32_0 = arith.constant 0 : i32
    %c0_i32_1 = arith.constant 0 : i32
    return %c0_i32, %c0_i32_0 : i32, i32
  }
  func.func @transform_5(%arg0: i32, %arg1: memref<1xi32, #tpu.memory_space<smem>>) -> (i32, i32) {
    %c0_i32 = arith.constant 0 : i32
    %c0_i32_0 = arith.constant 0 : i32
    %c0_i32_1 = arith.constant 0 : i32
    return %c0_i32, %c0_i32_0 : i32, i32
  }
  func.func @transform_6(%arg0: i32, %arg1: memref<1xi32, #tpu.memory_space<smem>>) -> (i32, i32) {
    %c0_i32 = arith.constant 0 : i32
    %c0_i32_0 = arith.constant 0 : i32
    %c0_i32_1 = arith.constant 0 : i32
    return %c0_i32, %c0_i32_0 : i32, i32
  }
  func.func @transform_7(%arg0: i32, %arg1: memref<1xi32, #tpu.memory_space<smem>>) -> (i32, i32) {
    %c0_i32 = arith.constant 0 : i32
    %c0_i32_0 = arith.constant 0 : i32
    return %c0_i32, %arg0 : i32, i32
  }
}

</mosaic_0001>

<llo_original>
// kernel: tpu_custom_call.1
$region0: #{tpu_custom_call.1}
  #allocation0 [shape = 'u32[]', space=smem, size = 0x4, offset = 0x4, fixed_abs, tag = 'smem constant byte address 0x4 - core index']
  #allocation1 [shape = 'u32[144,128]{1,0:T(1,128)}', space=vmem, size = 0x12000, scoped, tag = 'internal scratch']
  #allocation2 [shape = 's32[1]{0}', space=sflag, size = 0x4, scoped, tag = 'scoped memory for tpu_custom_call.1']
  #allocation3 [shape = 's32[1]{0:T(128)S(6)}', space=smem, size = 0x200, scoped, tag = 'prefetched SMEM operand 0']
  %s0 = inlined_call_operand.<no memory space> [shape: s32[1], index: 0, kind: input, shape index: {}]
  %s1 = inlined_call_operand.vmem [shape: f32[8,5,4], index: 1, kind: input, shape index: {}]
  %s2 = inlined_call_operand.vmem [shape: s32[8,4], index: 2, kind: input, shape index: {}]
  %s3 = inlined_call_operand.vmem [shape: f32[8,4], index: 3, kind: input, shape index: {}]
  %s4 = inlined_call_operand.vmem [shape: f32[5,1], index: 4, kind: input, shape index: {}]
  %s5 = inlined_call_operand.vmem [shape: f32[5,1], index: 5, kind: input, shape index: {}]
  %s6 = inlined_call_operand.vmem [shape: f32[5,5], index: 6, kind: input, shape index: {}]
  %s7 = inlined_call_operand.vmem [shape: f32[25,1], index: 7, kind: input, shape index: {}]
  %s8 = inlined_call_operand.hbm [shape: f32[1,4], index: 8, kind: output, shape index: {}]
  %s9 = sld [smem:[#allocation0]]
  $region45: #{tpu_custom_call.1} parent=0
    _
  %s11 = ssub.s32 1, %s9
  %s12 = scalar_select 0, %s11, %s9
  %13 = sst [smem:[#allocation3]] %s0
  $region1: #{tpu_custom_call.1} parent=0
    #allocation4 [shape = 'u8[512]{0}', space=vmem, size = 0x400, scoped, tag = 'output window, operand 0, single buffered']
    #allocation5 [shape = 's32[1]{0}', space=sflag, size = 0x4, scoped, tag = 'scoped memory for tpu_custom_call.1']
    %14 = vsyncpa [#allocation5], 0
    // Predicated region
    $region2: #{tpu_custom_call.1} parent=1 // pred_check
      _
    $region3: #{tpu_custom_call.1} parent=1 // pred_check_branch
      %16 = sbr.rel (0) target = $region5
    $region4: #{tpu_custom_call.1} parent=1 // pred_region
      _
    $region5: #{tpu_custom_call.1} parent=1 // pred_fallthru
      _
    // Predicated region
    $region6: #{tpu_custom_call.1} parent=1 // pred_check
      _
    $region7: #{tpu_custom_call.1} parent=1 // pred_check_branch
      %18 = sbr.rel (0) target = $region9
    $region8: #{tpu_custom_call.1} parent=1 // pred_region
      _
    $region9: #{tpu_custom_call.1} parent=1 // pred_fallthru
      _
    // Predicated region
    $region10: #{tpu_custom_call.1} parent=1 // pred_check
      _
    $region11: #{tpu_custom_call.1} parent=1 // pred_check_branch
      %20 = sbr.rel (0) target = $region13
    $region12: #{tpu_custom_call.1} parent=1 // pred_region
      _
    $region13: #{tpu_custom_call.1} parent=1 // pred_fallthru
      _
    // Predicated region
    $region14: #{tpu_custom_call.1} parent=1 // pred_check
      _
    $region15: #{tpu_custom_call.1} parent=1 // pred_check_branch
      %22 = sbr.rel (0) target = $region17
    $region16: #{tpu_custom_call.1} parent=1 // pred_region
      _
    $region17: #{tpu_custom_call.1} parent=1 // pred_fallthru
      _
    // Predicated region
    $region18: #{tpu_custom_call.1} parent=1 // pred_check
      _
    $region19: #{tpu_custom_call.1} parent=1 // pred_check_branch
      %24 = sbr.rel (0) target = $region21
    $region20: #{tpu_custom_call.1} parent=1 // pred_region
      _
    $region21: #{tpu_custom_call.1} parent=1 // pred_fallthru
      _
    // Predicated region
    $region22: #{tpu_custom_call.1} parent=1 // pred_check
      _
    $region23: #{tpu_custom_call.1} parent=1 // pred_check_branch
      %26 = sbr.rel (0) target = $region25
    $region24: #{tpu_custom_call.1} parent=1 // pred_region
      _
    $region25: #{tpu_custom_call.1} parent=1 // pred_fallthru
      _
    // Predicated region
    $region26: #{tpu_custom_call.1} parent=1 // pred_check
      _
    $region27: #{tpu_custom_call.1} parent=1 // pred_check_branch
      %28 = sbr.rel (0) target = $region29
    $region28: #{tpu_custom_call.1} parent=1 // pred_region
      _
    $region29: #{tpu_custom_call.1} parent=1 // pred_fallthru
      _
    %v29 = vld [vmem:[%s4] sm:$0x1f]
    %v30 = vld [vmem:[%s5] sm:$0x1f]
    %v31 = vld [vmem:[%s6] sm:$0x1f]
    %v32 = vld [vmem:[%s7] sm:$0xff]
    %v33 = vld [vmem:[%s7 + $0x8] sm:$0xff]
    %v34 = vld [vmem:[%s7 + $0x10] sm:$0xff]
    %v35 = vld [vmem:[%s7 + $0x18] sm:$0x1]
    %vm36 = vcmask 36864
    %v37 = vsel %vm36, %v31, -inf
    %38 = vmax.xlane.f32.xlu0 %v37
    %v39 = vpop.xlane.xlu0 %38
    %v40 = vsub.f32 %v31, %v39
    %v41 = vmul.f32 %v40, 1.442695
    %v42 = vpow.pop %v41
    %v43 = vlaneseq
    %v44 = vshrl.u32 %v43, 7
    %v45 = vadd.s32 %v44, 8
    %v46 = vadd.s32 %v44, 16
    %v47 = vadd.s32 %v44, 24
    %v48 = vld [vmem:[%s1] sm:$0x1f]
    %v49 = vld [vmem:[%s2] sm:$0x1]
    %v50 = vlaneseq
    %v51 = vshrl.u32 %v50, 7
    %v52 = vsub.s32 0, %v51
    %v53 = vrot.slane %v49, %v52
    %vm54 = vcmp.eq.s32.totalorder %v44, %v53
    %v55 = vsel %vm54, 1, 0
    %v56 = vcvt.s32.f32 %v55
    %58 = vset.pattern.permute.xlu0 0
    %59 = vperm.xlu0 %58, %v29
    %v60 = vpop.permute.xlu0 %59
    %v62 = vadd.f32 %v60, %v48
    %v63 = vmul.f32 %v56, %v62
    %vm64 = vcmask 28672
    %v65 = vsel %vm64, %v63, 0.0
    %v66 = vrot.slane %v65, 4
    %v67 = vadd.f32 %v65, %v66
    %v68 = vrot.slane %v67, 2
    %v69 = vadd.f32 %v67, %v68
    %v70 = vrot.slane %v69, 1
    %v71 = vadd.f32 %v69, %v70
    %s72 = sld [smem:[#allocation3]]
    // While loop
    $region30: #{tpu_custom_call.1} parent=1 // loop_pre_header
      _
    $region31: #{tpu_custom_call.1} parent=1 // loop_header
      %s74 = sphi 1, %s76
      %p75 = scmp.ge.s32.totalorder %s74, %s72
      %v79 = vphi %v62, %v190
      %v80 = vphi %v71, %v265
      %v81 = vphi %v49, %v266
      %v82 = vphi %v49, %v87
    $region32: #{tpu_custom_call.1} parent=1 // loop_header_branch
      %78 = sbr.rel (%p75) target = $region36
    $region33: #{tpu_custom_call.1} parent=1 // loop_body
      %s83 = smul.u32 %s74, 8
      %s84 = scalar_lea.vmem %s1, %s83
      %v85 = vld [vmem:[%s84] sm:$0x1f]
      %s86 = scalar_lea.vmem %s2, %s74
      %v87 = vld [vmem:[%s86] sm:$0x1]
      %s88 = scalar_lea.vmem %s3, %s74
      %v89 = vld [vmem:[%s88] sm:$0x1]
      %v90 = vsel %vm64, %v79, -inf
      %v91 = vrot.slane %v90, 4
      %v92 = vmax.f32 %v90, %v91
      %v93 = vrot.slane %v92, 2
      %v94 = vmax.f32 %v92, %v93
      %v95 = vrot.slane %v94, 1
      %v96 = vmax.f32 %v94, %v95
      %v97 = vsub.f32 %v79, %v96
      %v98 = vmul.f32 %v97, 1.442695
      %v99 = vpow.pop %v98
      %vm100 = vcmask 39936
      %v102 = vsel %vm100, %v42, 0
      %vm104 = vcmask 1044480
      %v106 = vsel %vm104, %v99, 0
      %108 = vmatprep.subr.mxu0 0.0
      %109 = vmatpush1.msra.mxu0 0.0
      %110 = vmatprep.subr.mxu0 0.0
      %111 = vmatpush1.msra.mxu0 0.0
      %112 = vmatprep.subr.mxu0 0.0
      %113 = vmatpush1.msra.mxu0 0.0
      %114 = vmatprep.subr.mxu0 0.0
      %115 = vmatpush1.msra.mxu0 0.0
      %116 = vmatprep.subr.mxu0 0.0
      %117 = vmatpush1.msra.mxu0 0.0
      %118 = vmatprep.subr.mxu0 0.0
      %119 = vmatpush1.msra.mxu0 0.0
      %120 = vmatprep.subr.mxu0 0.0
      %121 = vmatpush1.msra.mxu0 0.0
      %122 = vmatprep.subr.mxu0 0.0
      %123 = vmatpush1.msra.mxu0 0.0
      %124 = vmatprep.subr.mxu0 0.0
      %125 = vmatpush1.msra.mxu0 0.0
      %126 = vmatprep.subr.mxu0 0.0
      %127 = vmatpush1.msra.mxu0 0.0
      %128 = vmatprep.subr.mxu0 0.0
      %129 = vmatpush1.msra.mxu0 0.0
      %130 = vmatprep.subr.mxu0 0.0
      %131 = vmatpush1.msra.mxu0 0.0
      %132 = vmatprep.subr.mxu0 0.0
      %133 = vmatpush1.msra.mxu0 0.0
      %134 = vmatprep.subr.mxu0 0.0
      %135 = vmatpush1.msra.mxu0 0.0
      %136 = vmatprep.subr.mxu0 0.0
      %137 = vmatpush1.msra.mxu0 0.0
      %138 = vmatprep.subr.mxu0 0.0
      %139 = vmatpush1.msra.mxu0 %v106
      %140 = vmatprep.subr.mxu0 0.0
      %141 = vmatpush2.msra.mxu0 0.0
      %142 = vmatprep.subr.mxu0 0.0
      %143 = vmatpush2.msra.mxu0 0.0
      %144 = vmatprep.subr.mxu0 0.0
      %145 = vmatpush2.msra.mxu0 0.0
      %146 = vmatprep.subr.mxu0 0.0
      %147 = vmatpush2.msra.mxu0 0.0
      %148 = vmatprep.subr.mxu0 0.0
      %149 = vmatpush2.msra.mxu0 0.0
      %150 = vmatprep.subr.mxu0 0.0
      %151 = vmatpush2.msra.mxu0 0.0
      %152 = vmatprep.subr.mxu0 0.0
      %153 = vmatpush2.msra.mxu0 0.0
      %154 = vmatprep.subr.mxu0 0.0
      %155 = vmatpush2.msra.mxu0 0.0
      %156 = vmatprep.subr.mxu0 0.0
      %157 = vmatpush2.msra.mxu0 0.0
      %158 = vmatprep.subr.mxu0 0.0
      %159 = vmatpush2.msra.mxu0 0.0
      %160 = vmatprep.subr.mxu0 0.0
      %161 = vmatpush2.msra.mxu0 0.0
      %162 = vmatprep.subr.mxu0 0.0
      %163 = vmatpush2.msra.mxu0 0.0
      %164 = vmatprep.subr.mxu0 0.0
      %165 = vmatpush2.msra.mxu0 0.0
      %166 = vmatprep.subr.mxu0 0.0
      %167 = vmatpush2.msra.mxu0 0.0
      %168 = vmatprep.subr.mxu0 0.0
      %169 = vmatpush2.msra.mxu0 0.0
      %170 = vmatprep.subr.mxu0 0.0
      %171 = vmatpush2.msra.mxu0 0.0
      %172 = vmatprep.mubr.f32.mxu0 0.0
      %173 = vmatmul.mubr.f32.gmra.mxu0 %v102
      %v174 = vpop.f32.mrf.mxu0
      %v175 = vadd.f32 0.0, %v174
      %v176 = vpop.f32.mrf.mxu0
      %177 = vdwg.mxu0
      %v178 = vadd.f32 %v96, %v39
      %v179 = vlog2.pop %v175
      %v180 = vmul.f32 %v179, 0.6931472
      %v181 = vadd.f32 %v178, %v180
      %v182 = vadd.f32 %v181, %v85
      %vm183 = vcmp.gt.f32.partialorder %v89, 0.0
      %v184 = vsel %vm183, 1, 0
      %v185 = vlaneseq
      %v186 = vshrl.u32 %v185, 7
      %v187 = vsub.s32 0, %v186
      %v188 = vrot.slane %v184, %v187
      %vm189 = vcmp.eq.s32.totalorder %v188, 1
      %v190 = vsel %vm189, %v182, %v79
      %v191 = vlaneseq
      %v192 = vshrl.u32 %v191, 7
      %v193 = vsub.s32 0, %v192
      %v194 = vrot.slane %v87, %v193
      %vm195 = vcmp.eq.s32.totalorder %v44, %v194
      %v196 = vsel %vm195, 1, 0
      %v197 = vcvt.s32.f32 %v196
      %v198 = vmul.f32 %v197, %v85
      %v199 = vsel %vm64, %v198, 0.0
      %v200 = vrot.slane %v199, 4
      %v201 = vadd.f32 %v199, %v200
      %v202 = vrot.slane %v201, 2
      %v203 = vadd.f32 %v201, %v202
      %v204 = vrot.slane %v203, 1
      %v205 = vadd.f32 %v203, %v204
      %v206 = vmul.u32 %v82, 5
      %v207 = vadd.s32 %v206, %v87
      %v208 = vlaneseq
      %v209 = vshrl.u32 %v208, 7
      %v210 = vsub.s32 0, %v209
      %v211 = vrot.slane %v207, %v210
      %vm212 = vcmp.eq.s32.totalorder %v44, %v211
      %vm213 = vcmp.eq.s32.totalorder %v45, %v211
      %vm214 = vcmp.eq.s32.totalorder %v46, %v211
      %vm215 = vcmp.eq.s32.totalorder %v47, %v211
      %v216 = vsel %vm212, 1, 0
      %v217 = vsel %vm213, 1, 0
      %v218 = vsel %vm214, 1, 0
      %v219 = vsel %vm215, 1, 0
      %v220 = vcvt.s32.f32 %v216
      %v221 = vcvt.s32.f32 %v217
      %v222 = vcvt.s32.f32 %v218
      %v223 = vcvt.s32.f32 %v219
      %225 = vset.pattern.permute.xlu0 0
      %226 = vperm.xlu0 %225, %v32
      %v227 = vpop.permute.xlu0 %226
      %230 = vset.pattern.permute.xlu0 0
      %231 = vperm.xlu0 %230, %v33
      %v232 = vpop.permute.xlu0 %231
      %235 = vset.pattern.permute.xlu0 0
      %236 = vperm.xlu0 %235, %v34
      %v237 = vpop.permute.xlu0 %236
      %240 = vset.pattern.permute.xlu0 0
      %241 = vperm.xlu0 %240, %v35
      %v242 = vpop.permute.xlu0 %241
      %v244 = vmul.f32 %v220, %v227
      %v245 = vmul.f32 %v221, %v232
      %v246 = vmul.f32 %v222, %v237
      %v247 = vmul.f32 %v223, %v242
      %vm248 = vcmask 31744
      %v249 = vsel %vm248, %v244, 0.0
      %v250 = vsel %vm248, %v245, 0.0
      %v251 = vadd.f32 %v249, %v250
      %v252 = vsel %vm248, %v246, 0.0
      %v253 = vadd.f32 %v251, %v252
      %vm254 = vcmask 24576
      %v255 = vsel %vm254, %v247, 0.0
      %v256 = vadd.f32 %v253, %v255
      %v257 = vrot.slane %v256, 4
      %v258 = vadd.f32 %v256, %v257
      %v259 = vrot.slane %v258, 2
      %v260 = vadd.f32 %v258, %v259
      %v261 = vrot.slane %v260, 1
      %v262 = vadd.f32 %v260, %v261
      %v263 = vadd.f32 %v205, %v262
      %v264 = vmul.f32 %v89, %v263
      %v265 = vadd.f32 %v80, %v264
      %v266 = vsel %vm183, %v87, %v81
    $region34: #{tpu_custom_call.1} parent=1 // loop_footer
      %s76 = sadd.s32 %s74, 1
    $region35: #{tpu_custom_call.1} parent=1 // loop_footer_branch
      %73 = sbr.rel target = $region31
    $region36: #{tpu_custom_call.1} parent=1 // loop_exit
      _
    %v267 = vlaneseq
    %v268 = vshrl.u32 %v267, 7
    %v269 = vsub.s32 0, %v268
    %v270 = vrot.slane %v81, %v269
    %vm271 = vcmp.eq.s32.totalorder %v44, %v270
    %v272 = vsel %vm271, 1, 0
    %v273 = vcvt.s32.f32 %v272
    %275 = vset.pattern.permute.xlu0 0
    %276 = vperm.xlu0 %275, %v30
    %v277 = vpop.permute.xlu0 %276
    %v279 = vmul.f32 %v273, %v277
    %v280 = vsel %vm64, %v279, 0.0
    %v281 = vrot.slane %v280, 4
    %v282 = vadd.f32 %v280, %v281
    %v283 = vrot.slane %v282, 2
    %v284 = vadd.f32 %v282, %v283
    %v285 = vrot.slane %v284, 1
    %v286 = vadd.f32 %v284, %v285
    %v287 = vadd.f32 %v80, %v286
    %v288 = vadd.f32 %v79, %v277
    %v289 = vsel %vm64, %v288, -inf
    %v290 = vrot.slane %v289, 4
    %v291 = vmax.f32 %v289, %v290
    %v292 = vrot.slane %v291, 2
    %v293 = vmax.f32 %v291, %v292
    %v294 = vrot.slane %v293, 1
    %v295 = vmax.f32 %v293, %v294
    %v296 = vsub.f32 %v288, %v295
    %v297 = vmul.f32 %v296, 1.442695
    %v298 = vpow.pop %v297
    %v299 = vsel %vm64, %v298, 0.0
    %v300 = vrot.slane %v299, 4
    %v301 = vadd.f32 %v299, %v300
    %v302 = vrot.slane %v301, 2
    %v303 = vadd.f32 %v301, %v302
    %v304 = vrot.slane %v303, 1
    %v305 = vadd.f32 %v303, %v304
    %v306 = vlog2.pop %v305
    %v307 = vmul.f32 %v306, 0.6931472
    %v308 = vadd.f32 %v295, %v307
    %v309 = vsub.f32 %v308, %v287
    %vm310 = vcmask 24576
    %311 = vst.msk [vmem:[#allocation4] sm:$0x1] %vm310, %v309
    // Predicated region
    $region37: #{tpu_custom_call.1} parent=1 // pred_check
      _
    $region38: #{tpu_custom_call.1} parent=1 // pred_check_branch
      %313 = sbr.rel (0) target = $region40
    $region39: #{tpu_custom_call.1} parent=1 // pred_region
      %s315 = ssub.s32 16, 16
      %316 = vsyncadd [#allocation5], %s315
      %s318 = sshll.u32 [#allocation4], 4
      %s319 = int_to_ptr.vmem [resolvable:$true] %s318
      %321 = dma.vmem_to_hbm [thread:$0]  %s319, 16, %s8, [#allocation5]
    $region40: #{tpu_custom_call.1} parent=1 // pred_fallthru
      _
    // Predicated region
    $region41: #{tpu_custom_call.1} parent=1 // pred_check
      _
    $region42: #{tpu_custom_call.1} parent=1 // pred_check_branch
      %323 = sbr.rel (0) target = $region44
    $region43: #{tpu_custom_call.1} parent=1 // pred_region
      %324 = dma.done [#allocation5], 16
    $region44: #{tpu_custom_call.1} parent=1 // pred_fallthru
      _
    %325 = vsyncpa [#allocation5], 1

</llo_original>
